<compile_context>
chip_gen: v6e
topology: v6e:2x2x1
jax: 0.10.0
libtpu: 0.0.40
codegen_flags: <defaults>
</compile_context>

<pallas_src>
import functools

import jax
import jax.numpy as jnp
from jax.experimental import pallas as pl
from jax.experimental.pallas import tpu as pltpu


def _round_up(x, m):
    return ((x + m - 1) // m) * m


def _low_rank_linear_kernel(x_ref, u_ref, v_ref, b_ref, o_ref, acc_ref, *,
                            u_resident):
    """grid = (batch tiles, D-reduction tiles); V / bias / output row-block resident."""
    k = pl.program_id(1)

    @pl.when(k == 0)
    def _init():
        acc_ref[...] = jnp.zeros_like(acc_ref)

    # Stage 1: accumulate x @ U over the contraction axis (f32 accumulator).
    u_blk = u_ref[k] if u_resident else u_ref[...]
    acc_ref[...] += jnp.dot(x_ref[...], u_blk,
                            preferred_element_type=jnp.float32)

    @pl.when(k == pl.num_programs(1) - 1)
    def _finalize():
        # Stage 2: (x @ U) @ V + bias, once per batch tile.  (If V is a
        # reduced-precision dtype the f32 intermediate is rounded once here.)
        xu = acc_ref[...].astype(v_ref.dtype)
        y = jnp.dot(xu, v_ref[...], preferred_element_type=jnp.float32)
        y = y + b_ref[...].astype(jnp.float32)
        o_ref[...] = y.astype(o_ref.dtype)


def low_rank_linear(x, U, V, bias, *, tb_max=None, td_max=None):
    """y = x @ (U @ V) + bias, fused low-rank linear (lowRankLinear.forward)."""
    B, D = x.shape
    Du, R = U.shape
    Rv, O = V.shape
    assert D == Du and R == Rv and bias.shape == (O,)

    x_sz = jnp.dtype(x.dtype).itemsize
    u_sz = jnp.dtype(U.dtype).itemsize
    v_sz = jnp.dtype(V.dtype).itemsize
    b_sz = jnp.dtype(bias.dtype).itemsize

    # --- per-generation VMEM budget --------------------------------------
    try:
        vmem_cap = int(getattr(pltpu.get_tpu_info(), "vmem_capacity_bytes",
                               64 * 1024 * 1024))
    except Exception:                      # defensive (e.g. interpret mode)
        vmem_cap = 64 * 1024 * 1024
    # ~48 MiB on v7x (64 MiB physical), 96 MiB on v5e/v6e (128 MiB physical).
    vmem_limit = min(vmem_cap * 3 // 4, 96 * 1024 * 1024)
    budget = max(vmem_limit - (4 << 20), 8 << 20)   # headroom for Mosaic internals

    if tb_max is None:
        tb_max = 1024 if budget >= (80 << 20) else 512
    if td_max is None:
        td_max = 4096 if budget >= (80 << 20) else 2048
    tb_max = max(8, tb_max)
    td_max = max(128, td_max)

    # Rank padded to 128 so both MXU contractions are lane-dense.
    rp = _round_up(R, 128)

    def choose_tb(cap):
        if B <= cap:
            t = B                                   # full-dim block: always legal
        else:
            t = _round_up(pl.cdiv(B, pl.cdiv(B, cap)), 8)
        # v7x megacore: keep >=2 parallel batch blocks when the batch is big
        # enough (harmless on single-core v5e/v6e).
        if t >= 256 and pl.cdiv(B, t) < 2:
            t = _round_up(pl.cdiv(B, 2), 8)
        return t

    def choose_td(cap):
        if D <= cap:
            return D, D                             # single reduction step, no padding
        Dp_ = _round_up(D, 128)                     # only pad D when it must be tiled
        t = (min(cap, Dp_) // 128) * 128
        while t > 128 and Dp_ % t != 0:
            t -= 128
        return max(t, 128), Dp_

    def vmem_usage(tb_, td_, Dp_, u_res_):
        u_bytes = 2 * (Dp_ if u_res_ else td_) * rp * u_sz
        return (2 * tb_ * td_ * x_sz                # x (double-buffered, streamed)
                + u_bytes                           # U
                + 2 * rp * O * v_sz                 # V (resident)
                + 2 * O * b_sz                      # bias (resident)
                + 2 * tb_ * O * x_sz                # output row-block
                + tb_ * rp * 4)                     # f32 accumulator scratch

    tb_cap, td_cap = tb_max, td_max
    for _ in range(64):
        tb = choose_tb(tb_cap)
        td, Dp = choose_td(td_cap)
        nk = Dp // td
        u_res = (nk > 1) and (2 * Dp * rp * u_sz <= max(budget // 4, 2 << 20))
        if vmem_usage(tb, td, Dp, u_res) <= budget:
            break
        if td_cap > 512:
            td_cap = max(512, td_cap // 2)
        elif tb_cap > 8:
            tb_cap = max(8, tb_cap // 2)
        elif td_cap > 128:
            td_cap = max(128, td_cap // 2)
        else:
            break        # pathological shapes; let Mosaic report if it cannot fit
    nb = pl.cdiv(B, tb)

    # --- wrapper-side copies limited to the small U / V / bias operands ---
    # (x is only touched when D itself has to be zero-padded for tiling;
    #  B and O are never padded -- boundary blocks handle them.)
    xp = x if Dp == D else jnp.pad(x, ((0, 0), (0, Dp - D)))
    Up = U if (Dp == D and rp == R) else jnp.pad(U, ((0, Dp - D), (0, rp - R)))
    Vp = V if rp == R else jnp.pad(V, ((0, rp - R), (0, 0)))
    bp = bias.reshape(1, O)

    if u_res:
        Up = Up.reshape(nk, td, rp)                           # free row-major reshape
        u_spec = pl.BlockSpec((nk, td, rp), lambda i, k: (0, 0, 0))   # fully resident
    else:
        u_spec = pl.BlockSpec((td, rp), lambda i, k: (k, 0))          # streamed per k

    u_reads = nb if (nk > 1 and not u_res) else 1
    cost = pl.CostEstimate(
        flops=2 * B * Dp * rp + 2 * B * rp * O,
        transcendentals=0,
        bytes_accessed=int(B * Dp * x_sz + u_reads * Dp * rp * u_sz
                           + rp * O * v_sz + O * b_sz + B * O * x_sz),
    )

    kernel = functools.partial(_low_rank_linear_kernel, u_resident=u_res)
    return pl.pallas_call(
        kernel,
        out_shape=jax.ShapeDtypeStruct((B, O), x.dtype),
        grid_spec=pltpu.PrefetchScalarGridSpec(
            num_scalar_prefetch=0,
            grid=(nb, nk),
            in_specs=[
                pl.BlockSpec((tb, td), lambda i, k: (i, k)),   # x: streamed
                u_spec,                                        # U
                pl.BlockSpec((rp, O), lambda i, k: (0, 0)),    # V: resident
                pl.BlockSpec((1, O), lambda i, k: (0, 0)),     # bias: resident
            ],
            out_specs=pl.BlockSpec((tb, O), lambda i, k: (i, 0)),
            scratch_shapes=[pltpu.VMEM((tb, rp), jnp.float32)],
        ),
        compiler_params=pltpu.CompilerParams(
            dimension_semantics=("parallel", "arbitrary"),
            vmem_limit_bytes=int(vmem_limit),
        ),
        cost_estimate=cost,
    )(xp, Up, Vp, bp)


def init_params(key, input_size, output_size, rank):
    ku, kv = jax.random.split(key)
    U = jax.random.normal(ku, (input_size, rank), dtype=jnp.float32)
    V = jax.random.normal(kv, (rank, output_size), dtype=jnp.float32)
    bias = jnp.zeros((output_size,), dtype=jnp.float32)
    # orthogonal(): U <- QR(U).Q (reduced) -- init-time glue in plain JAX.
    U = jnp.linalg.qr(U, mode="reduced")[0]
    return U, V, bias


if __name__ == "__main__":
    key = jax.random.PRNGKey(0)
    kx, kp, kx2, kp2, kx3, kp3 = jax.random.split(key, 6)

    # Small shapes consistent with the module.
    batch, input_size, output_size, rank = 8, 32, 16, 4
    x = jax.random.normal(kx, (batch, input_size), dtype=jnp.float32)
    U, V, bias = init_params(kp, input_size, output_size, rank)
    y = jax.block_until_ready(low_rank_linear(x, U, V, bias))
    y_ref = x @ (U @ V) + bias
    assert y.shape == (batch, output_size)
    assert jnp.allclose(y, y_ref, atol=1e-5, rtol=1e-5)

    # Non-aligned batch / output dims: exercises boundary-block handling (no
    # wrapper padding of x, true-shaped output) and the 2-block parallel batch axis.
    batch2, in2, out2, rank2 = 384, 1024, 640, 16
    x2 = jax.random.normal(kx2, (batch2, in2), dtype=jnp.float32)
    U2, V2, b2 = init_params(kp2, in2, out2, rank2)
    y2 = jax.block_until_ready(low_rank_linear(x2, U2, V2, b2))
    y2_ref = x2 @ (U2 @ V2) + b2
    assert y2.shape == (batch2, out2)
    assert jnp.allclose(y2, y2_ref, atol=2e-3, rtol=2e-3)

    # Large contraction dim: exercises the multi-step k reduction with a
    # VMEM-resident U (td_max pinned so the path is taken on every generation).
    batch3, in3, out3, rank3 = 256, 4096, 256, 8
    x3 = jax.random.normal(kx3, (batch3, in3), dtype=jnp.float32)
    U3, V3, b3 = init_params(kp3, in3, out3, rank3)
    y3 = jax.block_until_ready(low_rank_linear(x3, U3, V3, b3, td_max=2048))
    y3_ref = x3 @ (U3 @ V3) + b3
    assert y3.shape == (batch3, out3)
    assert jnp.allclose(y3, y3_ref, atol=1e-2, rtol=1e-2)

    print("KERNEL_OK")
</pallas_src>

<mosaic_0001>
module attributes {stable_mosaic.version = 11 : i64} {
  func.func @_low_rank_linear_kernel(%arg0: i32, %arg1: i32, %arg2: memref<8x32xf32, #tpu.memory_space<vmem>>, %arg3: memref<32x128xf32, #tpu.memory_space<vmem>>, %arg4: memref<128x16xf32, #tpu.memory_space<vmem>>, %arg5: memref<1x16xf32, #tpu.memory_space<vmem>>, %arg6: memref<8x16xf32, #tpu.memory_space<vmem>>, %arg7: memref<8x128xf32, #tpu.memory_space<vmem>>) attributes {dimension_semantics = [#tpu.dimension_semantics<parallel>, #tpu.dimension_semantics<arbitrary>], iteration_bounds = array<i64: 1, 1>, scalar_prefetch = 0 : i64, scratch_operands = 1 : i64, tpu.core_type = #tpu.core_type<tc>, window_params = [{transform_indices = @transform_0, window_bounds = array<i64: 8, 32>}, {transform_indices = @transform_1, window_bounds = array<i64: 32, 128>}, {pipeline_mode = #tpu.pipeline_mode<synchronous>, transform_indices = @transform_2, window_bounds = array<i64: 128, 16>}, {pipeline_mode = #tpu.pipeline_mode<synchronous>, transform_indices = @transform_3, window_bounds = array<i64: 1, 16>}, {transform_indices = @transform_4, window_bounds = array<i64: 8, 16>}]} {
    %c0_i32 = arith.constant 0 : i32
    %0 = arith.cmpi eq, %arg1, %c0_i32 : i32
    %1 = arith.extui %0 : i1 to i32
    %c0_i32_0 = arith.constant 0 : i32
    %2 = arith.cmpi ne, %1, %c0_i32_0 : i32
    scf.if %2 {
      %cst_10 = arith.constant 0.000000e+00 : f32
      %12 = vector.broadcast %cst_10 : f32 to vector<8x128xf32>
      %c0_11 = arith.constant 0 : index
      %c0_12 = arith.constant 0 : index
      %13 = vector.load %arg7[%c0_11, %c0_12] : memref<8x128xf32, #tpu.memory_space<vmem>>, vector<8x128xf32>
      tpu.vector_store %arg7[%c0_11, %c0_12], %12 {strides = array<i32>} : memref<8x128xf32, #tpu.memory_space<vmem>>, vector<8x128xf32>,
    } else {
    }
    %c0 = arith.constant 0 : index
    %c0_1 = arith.constant 0 : index
    %3 = vector.load %arg3[%c0, %c0_1] : memref<32x128xf32, #tpu.memory_space<vmem>>, vector<32x128xf32>
    %c0_2 = arith.constant 0 : index
    %c0_3 = arith.constant 0 : index
    %4 = vector.load %arg7[%c0_2, %c0_3] : memref<8x128xf32, #tpu.memory_space<vmem>>, vector<8x128xf32>
    %c0_4 = arith.constant 0 : index
    %c0_5 = arith.constant 0 : index
    %5 = vector.load %arg2[%c0_4, %c0_5] : memref<8x32xf32, #tpu.memory_space<vmem>>, vector<8x32xf32>
    %cst = arith.constant dense<0.000000e+00> : vector<8x128xf32>
    %6 = tpu.matmul %5, %3, %cst {dimension_numbers = #tpu.dot_dimension_numbers<[1], [0], [0], [1], [0, 0, 1, 1], [], []>} : vector<8x32xf32>, vector<32x128xf32>, vector<8x128xf32> -> vector<8x128xf32>
    %7 = arith.addf %4, %6 : vector<8x128xf32>
    %c0_6 = arith.constant 0 : index
    %c0_7 = arith.constant 0 : index
    %8 = vector.load %arg7[%c0_6, %c0_7] : memref<8x128xf32, #tpu.memory_space<vmem>>, vector<8x128xf32>
    tpu.vector_store %arg7[%c0_6, %c0_7], %7 {strides = array<i32>} : memref<8x128xf32, #tpu.memory_space<vmem>>, vector<8x128xf32>,
    %c0_i32_8 = arith.constant 0 : i32
    %9 = arith.cmpi eq, %arg1, %c0_i32_8 : i32
    %10 = arith.extui %9 : i1 to i32
    %c0_i32_9 = arith.constant 0 : i32
    %11 = arith.cmpi ne, %10, %c0_i32_9 : i32
    scf.if %11 {
      %c0_10 = arith.constant 0 : index
      %c0_11 = arith.constant 0 : index
      %12 = vector.load %arg7[%c0_10, %c0_11] : memref<8x128xf32, #tpu.memory_space<vmem>>, vector<8x128xf32>
      %c0_12 = arith.constant 0 : index
      %c0_13 = arith.constant 0 : index
      %13 = vector.load %arg4[%c0_12, %c0_13] : memref<128x16xf32, #tpu.memory_space<vmem>>, vector<128x16xf32>
      %cst_14 = arith.constant dense<0.000000e+00> : vector<8x16xf32>
      %14 = tpu.matmul %12, %13, %cst_14 {dimension_numbers = #tpu.dot_dimension_numbers<[1], [0], [0], [1], [0, 0, 1, 1], [], []>} : vector<8x128xf32>, vector<128x16xf32>, vector<8x16xf32> -> vector<8x16xf32>
      %c0_15 = arith.constant 0 : index
      %c0_16 = arith.constant 0 : index
      %15 = vector.load %arg5[%c0_15, %c0_16] : memref<1x16xf32, #tpu.memory_space<vmem>>, vector<1x16xf32>
      %16 = vector.broadcast %15 : vector<1x16xf32> to vector<8x16xf32>
      %17 = arith.addf %14, %16 : vector<8x16xf32>
      %c0_17 = arith.constant 0 : index
      %c0_18 = arith.constant 0 : index
      %18 = vector.load %arg6[%c0_17, %c0_18] : memref<8x16xf32, #tpu.memory_space<vmem>>, vector<8x16xf32>
      tpu.vector_store %arg6[%c0_17, %c0_18], %17 {strides = array<i32>} : memref<8x16xf32, #tpu.memory_space<vmem>>, vector<8x16xf32>,
    } else {
    }
    return
  }
  func.func @transform_0(%arg0: i32, %arg1: i32) -> (i32, i32) {
    %c0_i32 = arith.constant 0 : i32
    return %arg0, %arg1 : i32, i32
  }
  func.func @transform_1(%arg0: i32, %arg1: i32) -> (i32, i32) {
    %c0_i32 = arith.constant 0 : i32
    %c0_i32_0 = arith.constant 0 : i32
    return %arg1, %c0_i32 : i32, i32
  }
  func.func @transform_2(%arg0: i32, %arg1: i32) -> (i32, i32) {
    %c0_i32 = arith.constant 0 : i32
    %c0_i32_0 = arith.constant 0 : i32
    %c0_i32_1 = arith.constant 0 : i32
    return %c0_i32, %c0_i32_0 : i32, i32
  }
  func.func @transform_3(%arg0: i32, %arg1: i32) -> (i32, i32) {
    %c0_i32 = arith.constant 0 : i32
    %c0_i32_0 = arith.constant 0 : i32
    %c0_i32_1 = arith.constant 0 : i32
    return %c0_i32, %c0_i32_0 : i32, i32
  }
  func.func @transform_4(%arg0: i32, %arg1: i32) -> (i32, i32) {
    %c0_i32 = arith.constant 0 : i32
    %c0_i32_0 = arith.constant 0 : i32
    return %arg0, %c0_i32 : i32, i32
  }
}

</mosaic_0001>

<llo_original>
// kernel: tpu_custom_call.1
$region0: #{tpu_custom_call.1}
  #allocation0 [shape = 'u32[]', space=smem, size = 0x4, offset = 0x4, fixed_abs, tag = 'smem constant byte address 0x4 - core index']
  #allocation1 [shape = 'u32[144,128]{1,0:T(1,128)}', space=vmem, size = 0x12000, scoped, tag = 'internal scratch']
  #allocation2 [shape = 'f32[8,128]{1,0:T(8,128)}', space=vmem, size = 0x1000, scoped, tag = 'scratch operand']
  %s0 = inlined_call_operand.vmem [shape: f32[8,32], index: 0, kind: input, shape index: {}]
  %s1 = inlined_call_operand.vmem [shape: f32[32,128], index: 1, kind: input, shape index: {}]
  %s2 = inlined_call_operand.vmem [shape: f32[128,16], index: 2, kind: input, shape index: {}]
  %s3 = inlined_call_operand.vmem [shape: f32[1,16], index: 3, kind: input, shape index: {}]
  %s4 = inlined_call_operand.hbm [shape: f32[8,16], index: 4, kind: output, shape index: {}]
  %s5 = sld [smem:[#allocation0]]
  $region34: #{tpu_custom_call.1} parent=0
    _
  %s7 = ssub.s32 1, %s5
  %s8 = scalar_select 0, %s7, %s5
  $region1: #{tpu_custom_call.1} parent=0
    #allocation3 [shape = 'u8[4096]{0}', space=vmem, size = 0x1000, scoped, tag = 'output window, operand 0, single buffered']
    #allocation4 [shape = 's32[1]{0}', space=sflag, size = 0x4, scoped, tag = 'scoped memory for tpu_custom_call.1']
    %9 = vsyncpa [#allocation4], 0
    // Predicated region
    $region2: #{tpu_custom_call.1} parent=1 // pred_check
      _
    $region3: #{tpu_custom_call.1} parent=1 // pred_check_branch
      %11 = sbr.rel (0) target = $region5
    $region4: #{tpu_custom_call.1} parent=1 // pred_region
      _
    $region5: #{tpu_custom_call.1} parent=1 // pred_fallthru
      _
    // Predicated region
    $region6: #{tpu_custom_call.1} parent=1 // pred_check
      _
    $region7: #{tpu_custom_call.1} parent=1 // pred_check_branch
      %13 = sbr.rel (0) target = $region9
    $region8: #{tpu_custom_call.1} parent=1 // pred_region
      _
    $region9: #{tpu_custom_call.1} parent=1 // pred_fallthru
      _
    // Predicated region
    $region10: #{tpu_custom_call.1} parent=1 // pred_check
      _
    $region11: #{tpu_custom_call.1} parent=1 // pred_check_branch
      %15 = sbr.rel (0) target = $region13
    $region12: #{tpu_custom_call.1} parent=1 // pred_region
      _
    $region13: #{tpu_custom_call.1} parent=1 // pred_fallthru
      _
    // Predicated region
    $region14: #{tpu_custom_call.1} parent=1 // pred_check
      _
    $region15: #{tpu_custom_call.1} parent=1 // pred_check_branch
      %17 = sbr.rel (0) target = $region17
    $region16: #{tpu_custom_call.1} parent=1 // pred_region
      _
    $region17: #{tpu_custom_call.1} parent=1 // pred_fallthru
      _
    %p18 = scmp.eq.s32.totalorder 0, 0
    // Predicated region
    $region18: #{tpu_custom_call.1} parent=1 // pred_check
      %p19 = pneg %p18
    $region19: #{tpu_custom_call.1} parent=1 // pred_check_branch
      %21 = sbr.rel (%p19) target = $region21
    $region20: #{tpu_custom_call.1} parent=1 // pred_region
      %22 = vst [vmem:[#allocation2] sm:$0xff] 0.0
    $region21: #{tpu_custom_call.1} parent=1 // pred_fallthru
      _
    %v23 = vld [vmem:[%s1] sm:$0xff]
    %v24 = vld [vmem:[%s1 + $0x8] sm:$0xff]
    %v25 = vld [vmem:[%s1 + $0x10] sm:$0xff]
    %v26 = vld [vmem:[%s1 + $0x18] sm:$0xff]
    %v27 = vld [vmem:[#allocation2] sm:$0xff]
    %v28 = vld [vmem:[%s0] sm:$0xff]
    %vm29 = vcmask 261120
    %v31 = vsel %vm29, %v28, 0
    %33 = vmatprep.subr.mxu0 0.0
    %34 = vmatpush1.msra.mxu0 0.0
    %35 = vmatprep.subr.mxu0 0.0
    %36 = vmatpush1.msra.mxu0 0.0
    %37 = vmatprep.subr.mxu0 0.0
    %38 = vmatpush1.msra.mxu0 0.0
    %39 = vmatprep.subr.mxu0 0.0
    %40 = vmatpush1.msra.mxu0 0.0
    %41 = vmatprep.subr.mxu0 0.0
    %42 = vmatpush1.msra.mxu0 0.0
    %43 = vmatprep.subr.mxu0 0.0
    %44 = vmatpush1.msra.mxu0 0.0
    %45 = vmatprep.subr.mxu0 0.0
    %46 = vmatpush1.msra.mxu0 0.0
    %47 = vmatprep.subr.mxu0 0.0
    %48 = vmatpush1.msra.mxu0 0.0
    %49 = vmatprep.subr.mxu0 0.0
    %50 = vmatpush1.msra.mxu0 0.0
    %51 = vmatprep.subr.mxu0 0.0
    %52 = vmatpush1.msra.mxu0 0.0
    %53 = vmatprep.subr.mxu0 0.0
    %54 = vmatpush1.msra.mxu0 0.0
    %55 = vmatprep.subr.mxu0 0.0
    %56 = vmatpush1.msra.mxu0 0.0
    %57 = vmatprep.subr.mxu0 0.0
    %58 = vmatpush1.msra.mxu0 %v26
    %59 = vmatprep.subr.mxu0 0.0
    %60 = vmatpush1.msra.mxu0 %v25
    %61 = vmatprep.subr.mxu0 0.0
    %62 = vmatpush1.msra.mxu0 %v24
    %63 = vmatprep.subr.mxu0 0.0
    %64 = vmatpush1.msra.mxu0 %v23
    %65 = vmatprep.subr.mxu0 0.0
    %66 = vmatpush2.msra.mxu0 0.0
    %67 = vmatprep.subr.mxu0 0.0
    %68 = vmatpush2.msra.mxu0 0.0
    %69 = vmatprep.subr.mxu0 0.0
    %70 = vmatpush2.msra.mxu0 0.0
    %71 = vmatprep.subr.mxu0 0.0
    %72 = vmatpush2.msra.mxu0 0.0
    %73 = vmatprep.subr.mxu0 0.0
    %74 = vmatpush2.msra.mxu0 0.0
    %75 = vmatprep.subr.mxu0 0.0
    %76 = vmatpush2.msra.mxu0 0.0
    %77 = vmatprep.subr.mxu0 0.0
    %78 = vmatpush2.msra.mxu0 0.0
    %79 = vmatprep.subr.mxu0 0.0
    %80 = vmatpush2.msra.mxu0 0.0
    %81 = vmatprep.subr.mxu0 0.0
    %82 = vmatpush2.msra.mxu0 0.0
    %83 = vmatprep.subr.mxu0 0.0
    %84 = vmatpush2.msra.mxu0 0.0
    %85 = vmatprep.subr.mxu0 0.0
    %86 = vmatpush2.msra.mxu0 0.0
    %87 = vmatprep.subr.mxu0 0.0
    %88 = vmatpush2.msra.mxu0 0.0
    %89 = vmatprep.subr.mxu0 0.0
    %90 = vmatpush2.msra.mxu0 0.0
    %91 = vmatprep.subr.mxu0 0.0
    %92 = vmatpush2.msra.mxu0 0.0
    %93 = vmatprep.subr.mxu0 0.0
    %94 = vmatpush2.msra.mxu0 0.0
    %95 = vmatprep.subr.mxu0 0.0
    %96 = vmatpush2.msra.mxu0 0.0
    %97 = vmatprep.mubr.f32.mxu0 0.0
    %98 = vmatmul.mubr.f32.gmra.mxu0 %v31
    %v99 = vpop.f32.mrf.mxu0
    %v100 = vadd.f32 0.0, %v99
    %v101 = vpop.f32.mrf.mxu0
    %102 = vdwg.mxu0
    %v103 = vadd.f32 %v27, %v100
    %104 = vst [vmem:[#allocation2] sm:$0xff] %v103
    // Predicated region
    $region22: #{tpu_custom_call.1} parent=1 // pred_check
      %p105 = pneg %p18
    $region23: #{tpu_custom_call.1} parent=1 // pred_check_branch
      %107 = sbr.rel (%p105) target = $region25
    $region24: #{tpu_custom_call.1} parent=1 // pred_region
      %v108 = vld [vmem:[#allocation2] sm:$0xff]
      %v109 = vld [vmem:[%s2] sm:$0xff]
      %v110 = vld [vmem:[%s2 + $0x8] sm:$0xff]
      %v111 = vld [vmem:[%s2 + $0x10] sm:$0xff]
      %v112 = vld [vmem:[%s2 + $0x18] sm:$0xff]
      %v113 = vld [vmem:[%s2 + $0x20] sm:$0xff]
      %v114 = vld [vmem:[%s2 + $0x28] sm:$0xff]
      %v115 = vld [vmem:[%s2 + $0x30] sm:$0xff]
      %v116 = vld [vmem:[%s2 + $0x38] sm:$0xff]
      %v117 = vld [vmem:[%s2 + $0x40] sm:$0xff]
      %v118 = vld [vmem:[%s2 + $0x48] sm:$0xff]
      %v119 = vld [vmem:[%s2 + $0x50] sm:$0xff]
      %v120 = vld [vmem:[%s2 + $0x58] sm:$0xff]
      %v121 = vld [vmem:[%s2 + $0x60] sm:$0xff]
      %v122 = vld [vmem:[%s2 + $0x68] sm:$0xff]
      %v123 = vld [vmem:[%s2 + $0x70] sm:$0xff]
      %v124 = vld [vmem:[%s2 + $0x78] sm:$0xff]
      %v125 = vld [vmem:[%s3] sm:$0x1]
      %v127 = vlaneseq
      %v128 = vshrl.u32 %v127, 7
      %v129 = vsub.s32 0, %v128
      %v130 = vrot.slane %v125, %v129
      %132 = vmatprep.subr.mxu0 0.0
      %133 = vmatpush1.msra.mxu0 %v124
      %134 = vmatprep.subr.mxu0 0.0
      %135 = vmatpush1.msra.mxu0 %v123
      %136 = vmatprep.subr.mxu0 0.0
      %137 = vmatpush1.msra.mxu0 %v122
      %138 = vmatprep.subr.mxu0 0.0
      %139 = vmatpush1.msra.mxu0 %v121
      %140 = vmatprep.subr.mxu0 0.0
      %141 = vmatpush1.msra.mxu0 %v120
      %142 = vmatprep.subr.mxu0 0.0
      %143 = vmatpush1.msra.mxu0 %v119
      %144 = vmatprep.subr.mxu0 0.0
      %145 = vmatpush1.msra.mxu0 %v118
      %146 = vmatprep.subr.mxu0 0.0
      %147 = vmatpush1.msra.mxu0 %v117
      %148 = vmatprep.subr.mxu0 0.0
      %149 = vmatpush1.msra.mxu0 %v116
      %150 = vmatprep.subr.mxu0 0.0
      %151 = vmatpush1.msra.mxu0 %v115
      %152 = vmatprep.subr.mxu0 0.0
      %153 = vmatpush1.msra.mxu0 %v114
      %154 = vmatprep.subr.mxu0 0.0
      %155 = vmatpush1.msra.mxu0 %v113
      %156 = vmatprep.subr.mxu0 0.0
      %157 = vmatpush1.msra.mxu0 %v112
      %158 = vmatprep.subr.mxu0 0.0
      %159 = vmatpush1.msra.mxu0 %v111
      %160 = vmatprep.subr.mxu0 0.0
      %161 = vmatpush1.msra.mxu0 %v110
      %162 = vmatprep.subr.mxu0 0.0
      %163 = vmatpush1.msra.mxu0 %v109
      %164 = vmatprep.subr.mxu0 0.0
      %165 = vmatpush2.msra.mxu0 0.0
      %166 = vmatprep.subr.mxu0 0.0
      %167 = vmatpush2.msra.mxu0 0.0
      %168 = vmatprep.subr.mxu0 0.0
      %169 = vmatpush2.msra.mxu0 0.0
      %170 = vmatprep.subr.mxu0 0.0
      %171 = vmatpush2.msra.mxu0 0.0
      %172 = vmatprep.subr.mxu0 0.0
      %173 = vmatpush2.msra.mxu0 0.0
      %174 = vmatprep.subr.mxu0 0.0
      %175 = vmatpush2.msra.mxu0 0.0
      %176 = vmatprep.subr.mxu0 0.0
      %177 = vmatpush2.msra.mxu0 0.0
      %178 = vmatprep.subr.mxu0 0.0
      %179 = vmatpush2.msra.mxu0 0.0
      %180 = vmatprep.subr.mxu0 0.0
      %181 = vmatpush2.msra.mxu0 0.0
      %182 = vmatprep.subr.mxu0 0.0
      %183 = vmatpush2.msra.mxu0 0.0
      %184 = vmatprep.subr.mxu0 0.0
      %185 = vmatpush2.msra.mxu0 0.0
      %186 = vmatprep.subr.mxu0 0.0
      %187 = vmatpush2.msra.mxu0 0.0
      %188 = vmatprep.subr.mxu0 0.0
      %189 = vmatpush2.msra.mxu0 0.0
      %190 = vmatprep.subr.mxu0 0.0
      %191 = vmatpush2.msra.mxu0 0.0
      %192 = vmatprep.subr.mxu0 0.0
      %193 = vmatpush2.msra.mxu0 0.0
      %194 = vmatprep.subr.mxu0 0.0
      %195 = vmatpush2.msra.mxu0 0.0
      %196 = vmatprep.mubr.f32.mxu0 0.0
      %197 = vmatmul.mubr.f32.gmra.mxu0 %v108
      %v198 = vpop.f32.mrf.mxu0
      %v199 = vadd.f32 %v130, %v198
      %v200 = vpop.f32.mrf.mxu0
      %201 = vdwg.mxu0
      %vm202 = vcmask 130048
      %203 = vst.msk [vmem:[#allocation3] sm:$0xff] %vm202, %v199
    $region25: #{tpu_custom_call.1} parent=1 // pred_fallthru
      _
    // Predicated region
    $region26: #{tpu_custom_call.1} parent=1 // pred_check
      _
    $region27: #{tpu_custom_call.1} parent=1 // pred_check_branch
      %205 = sbr.rel (0) target = $region29
    $region28: #{tpu_custom_call.1} parent=1 // pred_region
      %s207 = ssub.s32 128, 128
      %208 = vsyncadd [#allocation4], %s207
      %s210 = sshll.u32 [#allocation3], 4
      %s211 = int_to_ptr.vmem [resolvable:$true] %s210
      %213 = dma.vmem_to_hbm [thread:$0]  %s211, 128, %s4, [#allocation4]
    $region29: #{tpu_custom_call.1} parent=1 // pred_fallthru
      _
    // Predicated region
    $region30: #{tpu_custom_call.1} parent=1 // pred_check
      _
    $region31: #{tpu_custom_call.1} parent=1 // pred_check_branch
      %215 = sbr.rel (0) target = $region33
    $region32: #{tpu_custom_call.1} parent=1 // pred_region
      %216 = dma.done [#allocation4], 128
    $region33: #{tpu_custom_call.1} parent=1 // pred_fallthru
      _
    %217 = vsyncpa [#allocation4], 1

</llo_original>
